<compile_context>
chip_gen: v6e
topology: v6e:2x2x1
jax: 0.10.0
libtpu: 0.0.40
codegen_flags: <defaults>
</compile_context>

<pallas_src>
import functools

import jax
import jax.numpy as jnp
from jax.experimental import pallas as pl
from jax.experimental.pallas import tpu as pltpu


def _round_up(x, m):
    return ((x + m - 1) // m) * m


def _choose_tile(hw128, c, k, tile_p=None):
    """Largest lane tile (multiple of 128) that divides hw128 and fits a
    v7x-safe double-buffered VMEM budget."""
    blocks = hw128 // 128
    if tile_p is None:
        budget = 12 * 1024 * 1024           # bytes for double-buffered blocks (v7x-safe)
        per_lane = 4 * 2 * (c + k + 2)      # f32: x + logits + lbl, double-buffered
        tile_p = max(128, min(16384, budget // per_lane))
    target_blocks = max(1, min(blocks, tile_p // 128))
    for d in range(target_blocks, 0, -1):
        if blocks % d == 0:
            return d * 128
    return 128


def _seg_ce_kernel(num_classes, x_ref, w_ref, b_ref, lbl_ref,
                   logits_ref, loss_ref, cnt_ref):
    """One (core c, batch n, pixel-tile j) step (sup branch).

    x_ref      : (1, C, tile)    input pixels, channels on sublanes
    w_ref      : (K8, C)         1x1-conv weight (class rows padded to 8 for compute)
    b_ref      : (K8, 1)         bias
    lbl_ref    : (1, 1, tile)    int32 labels (-1 = ignore / padding)
    logits_ref : (1, K, tile)    logits output tile (only the real K classes)
    loss_ref   : (1, 1, 1)       per-core CE-sum accumulator  (resident)
    cnt_ref    : (1, 1, 1)       per-core valid-pixel counter (resident)
    """
    n = pl.program_id(1)
    j = pl.program_id(2)

    # Per-core accumulators: their output block depends only on the parallel
    # core axis, so they stay resident across the (arbitrary) n / j axes.
    @pl.when(jnp.logical_and(n == 0, j == 0))
    def _():
        loss_ref[...] = jnp.zeros_like(loss_ref)
        cnt_ref[...] = jnp.zeros_like(cnt_ref)

    x = x_ref[0].astype(jnp.float32)             # (C, tp)
    w = w_ref[...].astype(jnp.float32)           # (K8, C)
    b = b_ref[...].astype(jnp.float32)           # (K8, 1)

    # 1x1 conv as (K8, C) @ (C, tp) -> classes on sublanes, pixels on lanes.
    logits = jnp.dot(w, x, preferred_element_type=jnp.float32) + b   # (K8, tp)
    # Store only the real K class rows -> HBM writeback is (N, K, HW), no
    # K8 overdraw and no wrapper-side slice copy.
    logits_ref[0] = logits[:num_classes].astype(logits_ref.dtype)

    k8, tp = logits.shape
    class_ids = jax.lax.broadcasted_iota(jnp.int32, (k8, tp), 0)
    class_valid = class_ids < num_classes        # static mask for padded rows

    # log-softmax over real classes only; exp of the -1e30 padded rows
    # underflows to exactly 0, so no second mask is needed.
    masked = jnp.where(class_valid, logits, jnp.float32(-1e30))
    m = jnp.max(masked, axis=0, keepdims=True)                        # (1, tp)
    lse = m + jnp.log(jnp.sum(jnp.exp(masked - m), axis=0, keepdims=True))

    lbl = lbl_ref[0]                                                   # (1, tp)
    label_logit = jnp.sum(jnp.where(class_ids == lbl, logits, 0.0),
                          axis=0, keepdims=True)                       # (1, tp)

    valid = (lbl >= 0).astype(jnp.float32)       # label < 0 => ignore pixel
    per_pixel = (lse - label_logit) * valid      # (1, tp)

    loss_ref[0] += jnp.sum(per_pixel, axis=-1, keepdims=True)          # (1, 1)
    cnt_ref[0] += jnp.sum(valid, axis=-1, keepdims=True)               # (1, 1)


def _seg_logits_kernel(num_classes, x_ref, w_ref, b_ref, logits_ref):
    """Unsup branch: logits only — no labels DMA, no softmax/CE work."""
    x = x_ref[0].astype(jnp.float32)             # (C, tp)
    w = w_ref[...].astype(jnp.float32)           # (K8, C)
    b = b_ref[...].astype(jnp.float32)           # (K8, 1)
    logits = jnp.dot(w, x, preferred_element_type=jnp.float32) + b
    logits_ref[0] = logits[:num_classes].astype(logits_ref.dtype)


def full_model_semi_forward(inputs, labels, weight, bias, sup=True,
                            tile_p=None, n_cores=1):
    """FullModel_Semi.forward with model = 1x1 Conv2d(C->K), loss = pixelwise CE.

    inputs: (N, C, H, W) float,  labels: (N, H, W) int,
    weight: (K, C),  bias: (K,)
    sup=True  -> (loss[None], logits (N, K, H, W))
    sup=False -> logits

    n_cores=2 enables the per-core-partial grid axis for v7x megacore
    sharding; leave at 1 on single-TensorCore chips (v5e / v6e).
    """
    N, C, H, W = inputs.shape
    K = weight.shape[0]
    HW = H * W
    K8 = _round_up(max(K, 1), 8)                 # compute-only sublane padding
    HW128 = _round_up(HW, 128)

    n_cores = max(int(n_cores), 1)
    tile = _choose_tile(HW128, C, K, tile_p)
    n_j = HW128 // tile
    n_j_per_core = -(-n_j // n_cores)            # ceil-div
    HWpad = n_cores * n_j_per_core * tile

    x = inputs.reshape(N, C, HW)                 # free view of NCHW (no repack)
    if HWpad != HW:
        x = jnp.pad(x, ((0, 0), (0, 0), (0, HWpad - HW)))

    w = jnp.pad(weight.astype(jnp.float32), ((0, K8 - K), (0, 0)))       # (K8, C)
    b = jnp.pad(bias.astype(jnp.float32), (0, K8 - K)).reshape(K8, 1)    # (K8, 1)

    # Explicit VMEM cap: above the default scoped limits, below v7x's 64 MiB.
    step_bytes = 4 * tile * 2 * (C + K + 1)
    vmem_limit = int(min(48 * 1024 * 1024,
                         max(32 * 1024 * 1024, 4 * step_bytes)))

    if not sup:
        kernel = functools.partial(_seg_logits_kernel, K)
        logits_flat = pl.pallas_call(
            kernel,
            out_shape=jax.ShapeDtypeStruct((N, K, HWpad), jnp.float32),
            grid_spec=pltpu.PrefetchScalarGridSpec(
                num_scalar_prefetch=0,
                grid=(N, HWpad // tile),
                in_specs=[
                    pl.BlockSpec((1, C, tile), lambda n, j: (n, 0, j)),
                    pl.BlockSpec((K8, C), lambda n, j: (0, 0)),
                    pl.BlockSpec((K8, 1), lambda n, j: (0, 0)),
                ],
                out_specs=pl.BlockSpec((1, K, tile), lambda n, j: (n, 0, j)),
            ),
            compiler_params=pltpu.CompilerParams(
                dimension_semantics=("parallel", "parallel"),
                vmem_limit_bytes=vmem_limit),
        )(x, w, b)
        if HWpad != HW:
            return logits_flat[:, :, :HW].reshape(N, K, H, W)
        return logits_flat.reshape(N, K, H, W)   # free reshape, no copy

    lbl = labels.reshape(N, 1, HW).astype(jnp.int32)
    if HWpad != HW:
        lbl = jnp.pad(lbl, ((0, 0), (0, 0), (0, HWpad - HW)),
                      constant_values=-1)

    npc = n_j_per_core
    grid = (n_cores, N, n_j_per_core)
    kernel = functools.partial(_seg_ce_kernel, K)

    logits_flat, loss_parts, cnt_parts = pl.pallas_call(
        kernel,
        out_shape=(
            jax.ShapeDtypeStruct((N, K, HWpad), jnp.float32),
            jax.ShapeDtypeStruct((n_cores, 1, 1), jnp.float32),
            jax.ShapeDtypeStruct((n_cores, 1, 1), jnp.float32),
        ),
        grid_spec=pltpu.PrefetchScalarGridSpec(
            num_scalar_prefetch=0,
            grid=grid,
            in_specs=[
                pl.BlockSpec((1, C, tile),
                             lambda c, n, j: (n, 0, c * npc + j)),
                pl.BlockSpec((K8, C), lambda c, n, j: (0, 0)),
                pl.BlockSpec((K8, 1), lambda c, n, j: (0, 0)),
                pl.BlockSpec((1, 1, tile),
                             lambda c, n, j: (n, 0, c * npc + j)),
            ],
            out_specs=(
                pl.BlockSpec((1, K, tile),
                             lambda c, n, j: (n, 0, c * npc + j)),
                pl.BlockSpec((1, 1, 1), lambda c, n, j: (c, 0, 0)),
                pl.BlockSpec((1, 1, 1), lambda c, n, j: (c, 0, 0)),
            ),
        ),
        compiler_params=pltpu.CompilerParams(
            dimension_semantics=("parallel", "arbitrary", "arbitrary"),
            vmem_limit_bytes=vmem_limit),
    )(x, w, b, lbl)

    if HWpad != HW:
        logits = logits_flat[:, :, :HW].reshape(N, K, H, W)
    else:
        logits = logits_flat.reshape(N, K, H, W)   # free reshape, no copy

    loss = jnp.sum(loss_parts) / jnp.maximum(jnp.sum(cnt_parts), 1.0)
    return jnp.expand_dims(loss, 0), logits        # (loss.unsqueeze(0), outputs)


# TODO(synk): pixel_acc (F.interpolate bilinear resize + argmax accuracy) is a
# standalone helper not invoked in forward(); not implemented as a kernel.


if __name__ == "__main__":
    key = jax.random.PRNGKey(0)
    N, C, H, W = 2, 4, 16, 16
    K = 5  # num_classes

    k1, k2, k3, k4 = jax.random.split(key, 4)
    inputs = jax.random.normal(k1, (N, C, H, W), dtype=jnp.float32)
    labels = jax.random.randint(k2, (N, H, W), minval=-1, maxval=K,
                                dtype=jnp.int32)  # -1 = ignore
    weight = 0.1 * jax.random.normal(k3, (K, C), dtype=jnp.float32)  # Conv2d 1x1
    bias = 0.01 * jax.random.normal(k4, (K,), dtype=jnp.float32)

    loss, logits = full_model_semi_forward(inputs, labels, weight, bias, sup=True)
    jax.block_until_ready((loss, logits))

    logits_unsup = full_model_semi_forward(inputs, labels, weight, bias, sup=False)
    jax.block_until_ready(logits_unsup)

    # quick sanity check against plain-JAX reference
    ref_logits = jnp.einsum('nchw,kc->nkhw', inputs, weight) + bias[None, :, None, None]
    lp = jax.nn.log_softmax(ref_logits, axis=1)
    oh = jax.nn.one_hot(jnp.clip(labels, 0, K - 1), K, axis=1)
    valid = (labels >= 0).astype(jnp.float32)
    ref_loss = jnp.sum(-jnp.sum(oh * lp, axis=1) * valid) / jnp.maximum(jnp.sum(valid), 1.0)

    assert loss.shape == (1,)
    assert logits.shape == (N, K, H, W)
    assert jnp.allclose(logits, ref_logits, atol=1e-4), "logits mismatch"
    assert jnp.allclose(logits_unsup, ref_logits, atol=1e-4), "unsup logits mismatch"
    assert jnp.allclose(loss[0], ref_loss, atol=1e-4), "loss mismatch"

    print("KERNEL_OK")
</pallas_src>

<mosaic_0001>
module attributes {stable_mosaic.version = 11 : i64} {
  func.func @_seg_ce_kernel(%arg0: i32, %arg1: i32, %arg2: i32, %arg3: memref<1x4x256xf32, #tpu.memory_space<vmem>>, %arg4: memref<8x4xf32, #tpu.memory_space<vmem>>, %arg5: memref<8x1xf32, #tpu.memory_space<vmem>>, %arg6: memref<1x1x256xi32, #tpu.memory_space<vmem>>, %arg7: memref<1x5x256xf32, #tpu.memory_space<vmem>>, %arg8: memref<1x1x1xf32, #tpu.memory_space<vmem>>, %arg9: memref<1x1x1xf32, #tpu.memory_space<vmem>>) attributes {dimension_semantics = [#tpu.dimension_semantics<parallel>, #tpu.dimension_semantics<arbitrary>, #tpu.dimension_semantics<arbitrary>], iteration_bounds = array<i64: 1, 2, 1>, scalar_prefetch = 0 : i64, scratch_operands = 0 : i64, tpu.core_type = #tpu.core_type<tc>, window_params = [{transform_indices = @transform_0, window_bounds = array<i64: 1, 4, 256>}, {pipeline_mode = #tpu.pipeline_mode<synchronous>, transform_indices = @transform_1, window_bounds = array<i64: 8, 4>}, {pipeline_mode = #tpu.pipeline_mode<synchronous>, transform_indices = @transform_2, window_bounds = array<i64: 8, 1>}, {transform_indices = @transform_3, window_bounds = array<i64: 1, 1, 256>}, {transform_indices = @transform_4, window_bounds = array<i64: 1, 5, 256>}, {transform_indices = @transform_5, window_bounds = array<i64: 1, 1, 1>}, {transform_indices = @transform_6, window_bounds = array<i64: 1, 1, 1>}]} {
    %c0_i32 = arith.constant 0 : i32
    %0 = arith.cmpi eq, %arg1, %c0_i32 : i32
    %c0_i32_0 = arith.constant 0 : i32
    %1 = arith.cmpi eq, %arg2, %c0_i32_0 : i32
    %2 = arith.andi %0, %1 : i1
    %3 = arith.extui %2 : i1 to i32
    %c0_i32_1 = arith.constant 0 : i32
    %4 = arith.cmpi ne, %3, %c0_i32_1 : i32
    scf.if %4 {
      %cst_34 = arith.constant 0.000000e+00 : f32
      %60 = vector.broadcast %cst_34 : f32 to vector<1x1x1xf32>
      %c0_35 = arith.constant 0 : index
      %c0_36 = arith.constant 0 : index
      %c0_37 = arith.constant 0 : index
      %61 = vector.load %arg8[%c0_35, %c0_36, %c0_37] : memref<1x1x1xf32, #tpu.memory_space<vmem>>, vector<1x1x1xf32>
      tpu.vector_store %arg8[%c0_35, %c0_36, %c0_37], %60 {strides = array<i32>} : memref<1x1x1xf32, #tpu.memory_space<vmem>>, vector<1x1x1xf32>,
      %cst_38 = arith.constant 0.000000e+00 : f32
      %62 = vector.broadcast %cst_38 : f32 to vector<1x1x1xf32>
      %c0_39 = arith.constant 0 : index
      %c0_40 = arith.constant 0 : index
      %c0_41 = arith.constant 0 : index
      %63 = vector.load %arg9[%c0_39, %c0_40, %c0_41] : memref<1x1x1xf32, #tpu.memory_space<vmem>>, vector<1x1x1xf32>
      tpu.vector_store %arg9[%c0_39, %c0_40, %c0_41], %62 {strides = array<i32>} : memref<1x1x1xf32, #tpu.memory_space<vmem>>, vector<1x1x1xf32>,
    } else {
    }
    %c0 = arith.constant 0 : index
    %c0_2 = arith.constant 0 : index
    %c0_3 = arith.constant 0 : index
    %5 = vector.load %arg3[%c0, %c0_2, %c0_3] : memref<1x4x256xf32, #tpu.memory_space<vmem>>, vector<1x4x256xf32>
    %6 = vector.shape_cast %5 : vector<1x4x256xf32> to vector<4x256xf32>
    %c0_4 = arith.constant 0 : index
    %c0_5 = arith.constant 0 : index
    %7 = vector.load %arg4[%c0_4, %c0_5] : memref<8x4xf32, #tpu.memory_space<vmem>>, vector<8x4xf32>
    %c0_6 = arith.constant 0 : index
    %c0_7 = arith.constant 0 : index
    %8 = vector.load %arg5[%c0_6, %c0_7] : memref<8x1xf32, #tpu.memory_space<vmem>>, vector<8x1xf32>
    %cst = arith.constant dense<0.000000e+00> : vector<8x256xf32>
    %9 = tpu.matmul %7, %6, %cst {dimension_numbers = #tpu.dot_dimension_numbers<[1], [0], [0], [1], [0, 0, 1, 1], [], []>} : vector<8x4xf32>, vector<4x256xf32>, vector<8x256xf32> -> vector<8x256xf32>
    %10 = vector.broadcast %8 : vector<8x1xf32> to vector<8x256xf32>
    %11 = arith.addf %9, %10 : vector<8x256xf32>
    %12 = vector.extract_strided_slice %11 {offsets = [0, 0], sizes = [5, 256], strides = [1, 1]} : vector<8x256xf32> to vector<5x256xf32>
    %c0_8 = arith.constant 0 : index
    %c0_9 = arith.constant 0 : index
    %c0_10 = arith.constant 0 : index
    %13 = vector.load %arg7[%c0_8, %c0_9, %c0_10] : memref<1x5x256xf32, #tpu.memory_space<vmem>>, vector<1x5x256xf32>
    %14 = vector.shape_cast %13 : vector<1x5x256xf32> to vector<5x256xf32>
    %15 = vector.shape_cast %12 : vector<5x256xf32> to vector<1x5x256xf32>
    tpu.vector_store %arg7[%c0_8, %c0_9, %c0_10], %15 {strides = array<i32>} : memref<1x5x256xf32, #tpu.memory_space<vmem>>, vector<1x5x256xf32>,
    %16 = tpu.iota {dimensions = array<i32: 0>} : vector<8x256xi32>
    %c5_i32 = arith.constant 5 : i32
    %17 = vector.broadcast %c5_i32 : i32 to vector<8x256xi32>
    %18 = arith.cmpi slt, %16, %17 : vector<8x256xi32>
    %cst_11 = arith.constant -1.000000e+30 : f32
    %19 = vector.broadcast %cst_11 : f32 to vector<8x256xf32>
    %20 = arith.select %18, %11, %19 : vector<8x256xi1>, vector<8x256xf32>
    %cst_12 = arith.constant dense<0xFF800000> : vector<256xf32>
    %21 = vector.multi_reduction <maximumf>, %20, %cst_12 [0] : vector<8x256xf32> to vector<256xf32>
    %22 = vector.shape_cast %21 : vector<256xf32> to vector<1x256xf32>
    %23 = vector.broadcast %22 : vector<1x256xf32> to vector<8x256xf32>
    %24 = arith.subf %20, %23 : vector<8x256xf32>
    %25 = math.exp %24 : vector<8x256xf32>
    %cst_13 = arith.constant dense<0.000000e+00> : vector<256xf32>
    %26 = vector.multi_reduction <add>, %25, %cst_13 [0] : vector<8x256xf32> to vector<256xf32>
    %27 = vector.shape_cast %26 : vector<256xf32> to vector<1x256xf32>
    %28 = math.log %27 : vector<1x256xf32>
    %29 = arith.addf %22, %28 : vector<1x256xf32>
    %c0_14 = arith.constant 0 : index
    %c0_15 = arith.constant 0 : index
    %c0_16 = arith.constant 0 : index
    %30 = vector.load %arg6[%c0_14, %c0_15, %c0_16] : memref<1x1x256xi32, #tpu.memory_space<vmem>>, vector<1x1x256xi32>
    %31 = vector.shape_cast %30 : vector<1x1x256xi32> to vector<1x256xi32>
    %32 = vector.broadcast %31 : vector<1x256xi32> to vector<8x256xi32>
    %33 = arith.cmpi eq, %16, %32 : vector<8x256xi32>
    %cst_17 = arith.constant 0.000000e+00 : f32
    %34 = vector.broadcast %cst_17 : f32 to vector<8x256xf32>
    %35 = arith.select %33, %11, %34 : vector<8x256xi1>, vector<8x256xf32>
    %cst_18 = arith.constant dense<0.000000e+00> : vector<256xf32>
    %36 = vector.multi_reduction <add>, %35, %cst_18 [0] : vector<8x256xf32> to vector<256xf32>
    %37 = vector.shape_cast %36 : vector<256xf32> to vector<1x256xf32>
    %c0_i32_19 = arith.constant 0 : i32
    %38 = vector.broadcast %c0_i32_19 : i32 to vector<1x256xi32>
    %39 = arith.cmpi sge, %31, %38 : vector<1x256xi32>
    %40 = arith.extui %39 : vector<1x256xi1> to vector<1x256xi32>
    %41 = arith.sitofp %40 : vector<1x256xi32> to vector<1x256xf32>
    %42 = arith.subf %29, %37 : vector<1x256xf32>
    %43 = arith.mulf %42, %41 : vector<1x256xf32>
    %c0_20 = arith.constant 0 : index
    %c0_21 = arith.constant 0 : index
    %c0_22 = arith.constant 0 : index
    %44 = vector.load %arg8[%c0_20, %c0_21, %c0_22] : memref<1x1x1xf32, #tpu.memory_space<vmem>>, vector<1x1x1xf32>
    %45 = vector.shape_cast %44 : vector<1x1x1xf32> to vector<1x1xf32>
    %cst_23 = arith.constant dense<0.000000e+00> : vector<1xf32>
    %46 = vector.multi_reduction <add>, %43, %cst_23 [1] : vector<1x256xf32> to vector<1xf32>
    %47 = vector.shape_cast %46 : vector<1xf32> to vector<1x1xf32>
    %48 = arith.addf %45, %47 : vector<1x1xf32>
    %c0_24 = arith.constant 0 : index
    %c0_25 = arith.constant 0 : index
    %c0_26 = arith.constant 0 : index
    %49 = vector.load %arg8[%c0_24, %c0_25, %c0_26] : memref<1x1x1xf32, #tpu.memory_space<vmem>>, vector<1x1x1xf32>
    %50 = vector.shape_cast %49 : vector<1x1x1xf32> to vector<1x1xf32>
    %51 = vector.shape_cast %48 : vector<1x1xf32> to vector<1x1x1xf32>
    tpu.vector_store %arg8[%c0_24, %c0_25, %c0_26], %51 {strides = array<i32>} : memref<1x1x1xf32, #tpu.memory_space<vmem>>, vector<1x1x1xf32>,
    %c0_27 = arith.constant 0 : index
    %c0_28 = arith.constant 0 : index
    %c0_29 = arith.constant 0 : index
    %52 = vector.load %arg9[%c0_27, %c0_28, %c0_29] : memref<1x1x1xf32, #tpu.memory_space<vmem>>, vector<1x1x1xf32>
    %53 = vector.shape_cast %52 : vector<1x1x1xf32> to vector<1x1xf32>
    %cst_30 = arith.constant dense<0.000000e+00> : vector<1xf32>
    %54 = vector.multi_reduction <add>, %41, %cst_30 [1] : vector<1x256xf32> to vector<1xf32>
    %55 = vector.shape_cast %54 : vector<1xf32> to vector<1x1xf32>
    %56 = arith.addf %53, %55 : vector<1x1xf32>
    %c0_31 = arith.constant 0 : index
    %c0_32 = arith.constant 0 : index
    %c0_33 = arith.constant 0 : index
    %57 = vector.load %arg9[%c0_31, %c0_32, %c0_33] : memref<1x1x1xf32, #tpu.memory_space<vmem>>, vector<1x1x1xf32>
    %58 = vector.shape_cast %57 : vector<1x1x1xf32> to vector<1x1xf32>
    %59 = vector.shape_cast %56 : vector<1x1xf32> to vector<1x1x1xf32>
    tpu.vector_store %arg9[%c0_31, %c0_32, %c0_33], %59 {strides = array<i32>} : memref<1x1x1xf32, #tpu.memory_space<vmem>>, vector<1x1x1xf32>,
    return
  }
  func.func @transform_0(%arg0: i32, %arg1: i32, %arg2: i32) -> (i32, i32, i32) {
    %c1_i32 = arith.constant 1 : i32
    %0 = arith.muli %arg0, %c1_i32 : i32
    %1 = arith.addi %0, %arg2 : i32
    %c0_i32 = arith.constant 0 : i32
    %c0_i32_0 = arith.constant 0 : i32
    return %arg1, %c0_i32, %1 : i32, i32, i32
  }
  func.func @transform_1(%arg0: i32, %arg1: i32, %arg2: i32) -> (i32, i32) {
    %c0_i32 = arith.constant 0 : i32
    %c0_i32_0 = arith.constant 0 : i32
    %c0_i32_1 = arith.constant 0 : i32
    return %c0_i32, %c0_i32_0 : i32, i32
  }
  func.func @transform_2(%arg0: i32, %arg1: i32, %arg2: i32) -> (i32, i32) {
    %c0_i32 = arith.constant 0 : i32
    %c0_i32_0 = arith.constant 0 : i32
    %c0_i32_1 = arith.constant 0 : i32
    return %c0_i32, %c0_i32_0 : i32, i32
  }
  func.func @transform_3(%arg0: i32, %arg1: i32, %arg2: i32) -> (i32, i32, i32) {
    %c1_i32 = arith.constant 1 : i32
    %0 = arith.muli %arg0, %c1_i32 : i32
    %1 = arith.addi %0, %arg2 : i32
    %c0_i32 = arith.constant 0 : i32
    %c0_i32_0 = arith.constant 0 : i32
    return %arg1, %c0_i32, %1 : i32, i32, i32
  }
  func.func @transform_4(%arg0: i32, %arg1: i32, %arg2: i32) -> (i32, i32, i32) {
    %c1_i32 = arith.constant 1 : i32
    %0 = arith.muli %arg0, %c1_i32 : i32
    %1 = arith.addi %0, %arg2 : i32
    %c0_i32 = arith.constant 0 : i32
    %c0_i32_0 = arith.constant 0 : i32
    return %arg1, %c0_i32, %1 : i32, i32, i32
  }
  func.func @transform_5(%arg0: i32, %arg1: i32, %arg2: i32) -> (i32, i32, i32) {
    %c0_i32 = arith.constant 0 : i32
    %c0_i32_0 = arith.constant 0 : i32
    %c0_i32_1 = arith.constant 0 : i32
    return %arg0, %c0_i32, %c0_i32_0 : i32, i32, i32
  }
  func.func @transform_6(%arg0: i32, %arg1: i32, %arg2: i32) -> (i32, i32, i32) {
    %c0_i32 = arith.constant 0 : i32
    %c0_i32_0 = arith.constant 0 : i32
    %c0_i32_1 = arith.constant 0 : i32
    return %arg0, %c0_i32, %c0_i32_0 : i32, i32, i32
  }
}

</mosaic_0001>

<llo_original>
// kernel: tpu_custom_call.1
$region0: #{tpu_custom_call.1}
  #allocation0 [shape = 'u32[]', space=smem, size = 0x4, offset = 0x4, fixed_abs, tag = 'smem constant byte address 0x4 - core index']
  #allocation1 [shape = 'u32[144,128]{1,0:T(1,128)}', space=vmem, size = 0x12000, scoped, tag = 'internal scratch']
  %s0 = inlined_call_operand.vmem [shape: f32[2,4,256], index: 0, kind: input, shape index: {}]
  %s1 = inlined_call_operand.vmem [shape: f32[8,4], index: 1, kind: input, shape index: {}]
  %s2 = inlined_call_operand.vmem [shape: f32[8,1], index: 2, kind: input, shape index: {}]
  %s3 = inlined_call_operand.vmem [shape: s32[2,1,256], index: 3, kind: input, shape index: {}]
  %s4 = inlined_call_operand.vmem [shape: f32[2,5,256], index: 4, kind: output, shape index: {0}]
  %s5 = inlined_call_operand.hbm [shape: f32[1,1,1], index: 5, kind: output, shape index: {1}]
  %s6 = inlined_call_operand.hbm [shape: f32[1,1,1], index: 6, kind: output, shape index: {2}]
  %7 = xla_tuple %s4, %s5, %s6
  %s8 = sld [smem:[#allocation0]]
  $region69: #{tpu_custom_call.1} parent=0
    _
  %s10 = ssub.s32 1, %s8
  %s11 = scalar_select 0, %s10, %s8
  $region1: #{tpu_custom_call.1} parent=0
    #allocation2 [shape = 'u8[512]{0}', space=vmem, size = 0x400, scoped, tag = 'output window, operand 1, single buffered']
    #allocation3 [shape = 's32[2]{0}', space=sflag, size = 0x8, scoped, tag = 'scoped memory for tpu_custom_call.1']
    #allocation4 [shape = 'u8[512]{0}', space=vmem, size = 0x400, scoped, tag = 'output window, operand 2, single buffered']
    #allocation5 [shape = 's32[1]{0}', space=sflag, size = 0x4, scoped, tag = 'scoped memory for tpu_custom_call.1']
    %12 = vsyncpa [#allocation3], 0
    %13 = vsyncpa [#allocation5], 0
    loop: start=0, step=1, limit=4
    $region2: #{tpu_custom_call.1} parent=1 // loop_pre_header
      _
    $region3: #{tpu_custom_call.1} parent=1 // loop_header
      %s15 = sphi 0, %s19
      %p16 = scmp.ge.s32.totalorder %s15, 4
      %s22 = sphi 0, %s41
      %s23 = sphi 0, %s37
      %s24 = sphi 0, %s33
      %s25 = sphi 0, %s22
      %s26 = sphi 0, %s23
      %s27 = sphi 0, %s24
      %s28 = sphi 0, %s25
      %s29 = sphi 0, %s26
      %s30 = sphi 0, %s27
      %s48 = sphi 0, %s50
      %s51 = sphi 0, %s48
      %s52 = sphi 0, %s51
      %s68 = sphi 0, %s52
      %s72 = sphi 0, %s72
      %s74 = sphi 0, %s72
      %s75 = sphi 0, %s74
      %s89 = sphi 0, %s75
      %s93 = sphi 0, %s93
      %s95 = sphi 0, %s93
      %s96 = sphi 0, %s95
      %s110 = sphi 0, %s96
      %s120 = sphi 0, %s122
      %s123 = sphi 0, %s120
      %s124 = sphi 0, %s123
      %s140 = sphi 0, %s124
      %s150 = sphi 0, %s152
      %s153 = sphi 0, %s150
      %s154 = sphi 0, %s153
      %s170 = sphi 0, %s154
      %s176 = sphi 0, %s178
      %s179 = sphi 0, %s176
      %s180 = sphi 0, %s179
      %s196 = sphi 0, %s180
      %s202 = sphi 0, %s204
      %s205 = sphi 0, %s202
      %s206 = sphi 0, %s205
      %s222 = sphi 0, %s206
    $region4: #{tpu_custom_call.1} parent=1 // loop_header_branch
      %18 = sbr.rel (%p16) target = $region8
    $region5: #{tpu_custom_call.1} parent=1 // loop_body
      %s20 = ssub.s32 %s15, 1
      %s21 = ssub.s32 %s15, 2
      %s31 = sadd.s32 1, %s24
      %p32 = scmp.ge.s32.totalorder %s31, 1
      %s33 = scalar_select %p32, 0, %s31
      %s34 = sadd.s32 1, %s23
      %s35 = scalar_select %p32, %s34, %s23
      %p36 = scmp.ge.s32.totalorder %s35, 2
      %s37 = scalar_select %p36, 0, %s35
      %s38 = sadd.s32 1, %s22
      %s39 = scalar_select %p36, %s38, %s22
      %p40 = scmp.ge.s32.totalorder %s39, 1
      %s41 = scalar_select %p40, 0, %s39
      %s42 = sadd.s32 %s22, %s24
      %s43 = sadd.s32 %s41, %s33
      %s44 = ssub.s32 %s23, %s37
      %s45 = ssub.s32 %s42, %s43
      %s46 = sor.u32 %s44, %s45
      %p47 = scmp.eq.s32.totalorder %s46, 0
      %s49 = sadd.s32 %s48, 1
      %s50 = scalar_select %p47, %s48, %s49
      %p53 = pneg %p47
      %p54 = scmp.eq.s32.totalorder %s15, 1
      %p55 = por %p53, %p54
      %p56 = scmp.ne.s32.totalorder %s48, %s51
      %p57 = scmp.eq.s32.totalorder %s15, 0
      %p58 = por %p56, %p57
      %p59 = scmp.ne.s32.totalorder %s48, %s51
      %p60 = scmp.eq.s32.totalorder %s20, 1
      %p61 = por %p59, %p60
      %p62 = scmp.ne.s32.totalorder %s51, %s52
      %p63 = scmp.eq.s32.totalorder %s20, 0
      %p64 = por %p62, %p63
      %p65 = scmp.ne.s32.totalorder %s51, %s52
      %p66 = scmp.eq.s32.totalorder %s21, 1
      %p67 = por %p65, %p66
      %p69 = scmp.ne.s32.totalorder %s52, %s68
      %p70 = scmp.eq.s32.totalorder %s21, 0
      %p71 = por %p69, %p70
      %s73 = sadd.s32 %s72, 1
      %p76 = scmp.eq.s32.totalorder %s15, 1
      %p77 = scmp.ne.s32.totalorder %s72, %s74
      %p78 = scmp.eq.s32.totalorder %s15, 0
      %p79 = por %p77, %p78
      %p80 = scmp.ne.s32.totalorder %s72, %s74
      %p81 = scmp.eq.s32.totalorder %s20, 1
      %p82 = por %p80, %p81
      %p83 = scmp.ne.s32.totalorder %s74, %s75
      %p84 = scmp.eq.s32.totalorder %s20, 0
      %p85 = por %p83, %p84
      %p86 = scmp.ne.s32.totalorder %s74, %s75
      %p87 = scmp.eq.s32.totalorder %s21, 1
      %p88 = por %p86, %p87
      %p90 = scmp.ne.s32.totalorder %s75, %s89
      %p91 = scmp.eq.s32.totalorder %s21, 0
      %p92 = por %p90, %p91
      %s94 = sadd.s32 %s93, 1
      %p97 = scmp.eq.s32.totalorder %s15, 1
      %p98 = scmp.ne.s32.totalorder %s93, %s95
      %p99 = scmp.eq.s32.totalorder %s15, 0
      %p100 = por %p98, %p99
      %p101 = scmp.ne.s32.totalorder %s93, %s95
      %p102 = scmp.eq.s32.totalorder %s20, 1
      %p103 = por %p101, %p102
      %p104 = scmp.ne.s32.totalorder %s95, %s96
      %p105 = scmp.eq.s32.totalorder %s20, 0
      %p106 = por %p104, %p105
      %p107 = scmp.ne.s32.totalorder %s95, %s96
      %p108 = scmp.eq.s32.totalorder %s21, 1
      %p109 = por %p107, %p108
      %p111 = scmp.ne.s32.totalorder %s96, %s110
      %p112 = scmp.eq.s32.totalorder %s21, 0
      %p113 = por %p111, %p112
      %s114 = sadd.s32 %s22, %s24
      %s115 = sadd.s32 %s41, %s33
      %s116 = ssub.s32 %s23, %s37
      %s117 = ssub.s32 %s114, %s115
      %s118 = sor.u32 %s116, %s117
      %p119 = scmp.eq.s32.totalorder %s118, 0
      %s121 = sadd.s32 %s120, 1
      %s122 = scalar_select %p119, %s120, %s121
      %p125 = pneg %p119
      %p126 = scmp.eq.s32.totalorder %s15, 1
      %p127 = por %p125, %p126
      %p128 = scmp.ne.s32.totalorder %s120, %s123
      %p129 = scmp.eq.s32.totalorder %s15, 0
      %p130 = por %p128, %p129
      %p131 = scmp.ne.s32.totalorder %s120, %s123
      %p132 = scmp.eq.s32.totalorder %s20, 1
      %p133 = por %p131, %p132
      %p134 = scmp.ne.s32.totalorder %s123, %s124
      %p135 = scmp.eq.s32.totalorder %s20, 0
      %p136 = por %p134, %p135
      %p137 = scmp.ne.s32.totalorder %s123, %s124
      %p138 = scmp.eq.s32.totalorder %s21, 1
      %p139 = por %p137, %p138
      %p141 = scmp.ne.s32.totalorder %s124, %s140
      %p142 = scmp.eq.s32.totalorder %s21, 0
      %p143 = por %p141, %p142
      %s144 = sadd.s32 %s22, %s24
      %s145 = sadd.s32 %s41, %s33
      %s146 = ssub.s32 %s23, %s37
      %s147 = ssub.s32 %s144, %s145
      %s148 = sor.u32 %s146, %s147
      %p149 = scmp.eq.s32.totalorder %s148, 0
      %s151 = sadd.s32 %s150, 1
      %s152 = scalar_select %p149, %s150, %s151
      %p155 = pneg %p149
      %p156 = scmp.eq.s32.totalorder %s15, 1
      %p157 = por %p155, %p156
      %p158 = scmp.ne.s32.totalorder %s150, %s153
      %p159 = scmp.eq.s32.totalorder %s15, 0
      %p160 = por %p158, %p159
      %p161 = scmp.ne.s32.totalorder %s150, %s153
      %p162 = scmp.eq.s32.totalorder %s20, 1
      %p163 = por %p161, %p162
      %p164 = scmp.ne.s32.totalorder %s153, %s154
      %p165 = scmp.eq.s32.totalorder %s20, 0
      %p166 = por %p164, %p165
      %p167 = scmp.ne.s32.totalorder %s153, %s154
      %p168 = scmp.eq.s32.totalorder %s21, 1
      %p169 = por %p167, %p168
      %p171 = scmp.ne.s32.totalorder %s154, %s170
      %p172 = scmp.eq.s32.totalorder %s21, 0
      %p173 = por %p171, %p172
      %s174 = ssub.s32 %s22, %s41
      %p175 = scmp.eq.s32.totalorder %s174, 0
      %s177 = sadd.s32 %s176, 1
      %s178 = scalar_select %p175, %s176, %s177
      %p181 = pneg %p175
      %p182 = scmp.eq.s32.totalorder %s15, 1
      %p183 = por %p181, %p182
      %p184 = scmp.ne.s32.totalorder %s176, %s179
      %p185 = scmp.eq.s32.totalorder %s15, 0
      %p186 = por %p184, %p185
      %p187 = scmp.ne.s32.totalorder %s176, %s179
      %p188 = scmp.eq.s32.totalorder %s20, 1
      %p189 = por %p187, %p188
      %p190 = scmp.ne.s32.totalorder %s179, %s180
      %p191 = scmp.eq.s32.totalorder %s20, 0
      %p192 = por %p190, %p191
      %p193 = scmp.ne.s32.totalorder %s179, %s180
      %p194 = scmp.eq.s32.totalorder %s21, 1
      %p195 = por %p193, %p194
      %p197 = scmp.ne.s32.totalorder %s180, %s196
      %p198 = scmp.eq.s32.totalorder %s21, 0
      %p199 = por %p197, %p198
      %s200 = ssub.s32 %s22, %s41
      %p201 = scmp.eq.s32.totalorder %s200, 0
      %s203 = sadd.s32 %s202, 1
      %s204 = scalar_select %p201, %s202, %s203
      %p207 = pneg %p201
      %p208 = scmp.eq.s32.totalorder %s15, 1
      %p209 = por %p207, %p208
      %p210 = scmp.ne.s32.totalorder %s202, %s205
      %p211 = scmp.eq.s32.totalorder %s15, 0
      %p212 = por %p210, %p211
      %p213 = scmp.ne.s32.totalorder %s202, %s205
      %p214 = scmp.eq.s32.totalorder %s20, 1
      %p215 = por %p213, %p214
      %p216 = scmp.ne.s32.totalorder %s205, %s206
      %p217 = scmp.eq.s32.totalorder %s20, 0
      %p218 = por %p216, %p217
      %p219 = scmp.ne.s32.totalorder %s205, %s206
      %p220 = scmp.eq.s32.totalorder %s21, 1
      %p221 = por %p219, %p220
      %p223 = scmp.ne.s32.totalorder %s206, %s222
      %p224 = scmp.eq.s32.totalorder %s21, 0
      %p225 = por %p223, %p224
      %p226 = scmp.le.s32.totalorder 1, %s15
      %p227 = scmp.lt.s32.totalorder %s15, 3
      %p228 = pnand %p226, %p227
      %p229 = pneg %p228
      // Predicated region
      $region9: #{tpu_custom_call.1} parent=5 // pred_check
        _
      $region10: #{tpu_custom_call.1} parent=5 // pred_check_branch
        %231 = sbr.rel (%p228) target = $region12
      $region11: #{tpu_custom_call.1} parent=5 // pred_region
        %s232 = ssub.s32 %s15, 1
        // Predicated region
        $region13: #{tpu_custom_call.1} parent=11 // pred_check
          %p233 = pneg %p85
        $region14: #{tpu_custom_call.1} parent=11 // pred_check_branch
          %235 = sbr.rel (%p233) target = $region16
        $region15: #{tpu_custom_call.1} parent=11 // pred_region
          _
        $region16: #{tpu_custom_call.1} parent=11 // pred_fallthru
          _
        // Predicated region
        $region17: #{tpu_custom_call.1} parent=11 // pred_check
          %p236 = pneg %p106
        $region18: #{tpu_custom_call.1} parent=11 // pred_check_branch
          %238 = sbr.rel (%p236) target = $region20
        $region19: #{tpu_custom_call.1} parent=11 // pred_region
          _
        $region20: #{tpu_custom_call.1} parent=11 // pred_fallthru
          _
      $region12: #{tpu_custom_call.1} parent=5 // pred_fallthru
        _
      %p239 = scmp.lt.s32.totalorder %s15, 2
      // Predicated region
      $region21: #{tpu_custom_call.1} parent=5 // pred_check
        %p240 = pneg %p239
      $region22: #{tpu_custom_call.1} parent=5 // pred_check_branch
        %242 = sbr.rel (%p240) target = $region24
      $region23: #{tpu_custom_call.1} parent=5 // pred_region
        // Predicated region
        $region25: #{tpu_custom_call.1} parent=23 // pred_check
          %p243 = pneg %p58
        $region26: #{tpu_custom_call.1} parent=23 // pred_check_branch
          %245 = sbr.rel (%p243) target = $region28
        $region27: #{tpu_custom_call.1} parent=23 // pred_region
          %s246 = sadd.s32 %s22, %s24
          %s247 = smul.u32 2, %s246
          %p248 = scmp.lt.s32.totalorder %s23, 1
          %s249 = scalar_select %p248, %s23, 1
          %p250 = scmp.lt.s32.totalorder %s247, 1
          %s251 = scalar_select %p250, %s247, 1
          %s252 = smul.addr %s249, 2
          %s253 = sadd.s32 %s251, %s252
          %s254 = smul.addr %s253, 4
          %s255 = scalar_lea.vmem %s0, %s254
          %s256 = sadd.s32 %s22, %s24
          %s257 = smul.u32 2, %s256
        $region28: #{tpu_custom_call.1} parent=23 // pred_fallthru
          _
        // Predicated region
        $region29: #{tpu_custom_call.1} parent=23 // pred_check
          %p258 = pneg %p130
        $region30: #{tpu_custom_call.1} parent=23 // pred_check_branch
          %260 = sbr.rel (%p258) target = $region32
        $region31: #{tpu_custom_call.1} parent=23 // pred_region
          %s261 = sadd.s32 %s22, %s24
          %s262 = smul.u32 2, %s261
          %p263 = scmp.lt.s32.totalorder %s23, 1
          %s264 = scalar_select %p263, %s23, 1
          %p265 = scmp.lt.s32.totalorder %s262, 1
          %s266 = scalar_select %p265, %s262, 1
          %s267 = smul.addr %s264, 2
          %s268 = sadd.s32 %s266, %s267
          %s269 = scalar_lea.vmem %s3, %s268
          %s270 = sadd.s32 %s22, %s24
          %s271 = smul.u32 2, %s270
        $region32: #{tpu_custom_call.1} parent=23 // pred_fallthru
          _
      $region24: #{tpu_custom_call.1} parent=5 // pred_fallthru
        _
      %p272 = scmp.le.s32.totalorder 1, %s15
      %p273 = scmp.lt.s32.totalorder %s15, 3
      %p274 = pnand %p272, %p273
      %p275 = pneg %p274
      // Predicated region
      $region33: #{tpu_custom_call.1} parent=5 // pred_check
        _
      $region34: #{tpu_custom_call.1} parent=5 // pred_check_branch
        %277 = sbr.rel (%p274) target = $region36
      $region35: #{tpu_custom_call.1} parent=5 // pred_region
        %s278 = ssub.s32 %s15, 1
        %s279 = sadd.s32 %s25, %s27
        %s280 = smul.u32 2, %s279
        %p281 = scmp.lt.s32.totalorder %s26, 1
        %s282 = scalar_select %p281, %s26, 1
        %p283 = scmp.lt.s32.totalorder %s280, 1
        %s284 = scalar_select %p283, %s280, 1
        %s285 = smul.addr %s282, 2
        %s286 = sadd.s32 %s284, %s285
        %s287 = smul.addr %s286, 4
        %s288 = scalar_lea.vmem %s0, %s287
        %p289 = pneg %p64
        %p290 = pneg %p61
        %p291 = pneg %p85
        %p292 = pneg %p82
        %p293 = pneg %p106
        %p294 = pneg %p103
        %s295 = sadd.s32 %s25, %s27
        %s296 = smul.u32 2, %s295
        %p297 = scmp.lt.s32.totalorder %s26, 1
        %s298 = scalar_select %p297, %s26, 1
        %p299 = scmp.lt.s32.totalorder %s296, 1
        %s300 = scalar_select %p299, %s296, 1
        %s301 = smul.addr %s298, 2
        %s302 = sadd.s32 %s300, %s301
        %s303 = scalar_lea.vmem %s3, %s302
        %p304 = pneg %p136
        %p305 = pneg %p133
        %p306 = pneg %p166
        %p307 = pneg %p163
        %s308 = sadd.s32 %s25, %s27
        %s309 = smul.u32 2, %s308
        %p310 = scmp.lt.s32.totalorder %s26, 1
        %s311 = scalar_select %p310, %s26, 1
        %p312 = scmp.lt.s32.totalorder %s309, 1
        %s313 = scalar_select %p312, %s309, 1
        %s314 = smul.addr %s311, 2
        %s315 = sadd.s32 %s313, %s314
        %s316 = smul.addr %s315, 8
        %s317 = scalar_lea.vmem %s4, %s316
        %p318 = pneg %p192
        %p319 = pneg %p189
        %p320 = pneg %p218
        %p321 = pneg %p215
        %s322 = sadd.s32 %s25, %s27
        %s323 = smul.u32 2, %s322
        %p324 = scmp.lt.s32.totalorder %s26, 1
        %s325 = scalar_select %p324, %s26, 1
        %p326 = scmp.lt.s32.totalorder %s323, 1
        %s327 = scalar_select %p326, %s323, 1
        %s328 = smul.addr %s325, 2
        %s329 = sadd.s32 %s327, %s328
        %s330 = smul.addr %s329, 4
        %s331 = scalar_lea.vmem %s0, %s330
        %s332 = sadd.s32 %s25, %s27
        %s333 = smul.u32 2, %s332
        %s334 = sadd.s32 %s25, %s27
        %s335 = smul.u32 2, %s334
        %p336 = scmp.lt.s32.totalorder %s26, 1
        %s337 = scalar_select %p336, %s26, 1
        %p338 = scmp.lt.s32.totalorder %s335, 1
        %s339 = scalar_select %p338, %s335, 1
        %s340 = smul.addr %s337, 2
        %s341 = sadd.s32 %s339, %s340
        %s342 = scalar_lea.vmem %s3, %s341
        %s343 = sadd.s32 %s25, %s27
        %s344 = smul.u32 2, %s343
        %s345 = sadd.s32 %s25, %s27
        %s346 = smul.u32 2, %s345
        %p347 = scmp.lt.s32.totalorder %s26, 1
        %s348 = scalar_select %p347, %s26, 1
        %p349 = scmp.lt.s32.totalorder %s346, 1
        %s350 = scalar_select %p349, %s346, 1
        %s351 = smul.addr %s348, 2
        %s352 = sadd.s32 %s350, %s351
        %s353 = smul.addr %s352, 8
        %s354 = scalar_lea.vmem %s4, %s353
        %s355 = sadd.s32 %s25, %s27
        %s356 = smul.u32 2, %s355
        %p357 = scmp.eq.s32.totalorder %s26, 0
        %p358 = scmp.eq.s32.totalorder %s27, 0
        %p359 = pnand %p357, %p358
        %p360 = pneg %p359
        // Predicated region
        $region37: #{tpu_custom_call.1} parent=35 // pred_check
          _
        $region38: #{tpu_custom_call.1} parent=35 // pred_check_branch
          %362 = sbr.rel (%p359) target = $region40
        $region39: #{tpu_custom_call.1} parent=35 // pred_region
          %vm363 = vcmask 0
          %364 = vst.msk [vmem:[#allocation2] sm:$0x1] %vm363, 0.0
          %365 = vst.msk [vmem:[#allocation4] sm:$0x1] %vm363, 0.0
        $region40: #{tpu_custom_call.1} parent=35 // pred_fallthru
          _
        %v366 = vld [vmem:[%s331] sm:$0xff]
        %v367 = vld [vmem:[%s1] sm:$0xff]
        %v368 = vld [vmem:[%s2] sm:$0xff]
        %370 = vset.pattern.permute.xlu0 0
        %371 = vperm.xlu0 %370, %v368
        %v372 = vpop.permute.xlu0 %371
        %v375 = vcombine.high %v366, %v366
        %vm376 = vcmask 31744
        %v378 = vsel %vm376, %v367, 0
        %vm380 = vcmask 1043456
        %v381 = vsel %vm380, %v366, 0
        %v383 = vsel %vm380, %v375, 0
        %385 = vmatprep.subr.mxu0 0.0
        %386 = vmatpush1.msra.mxu0 0.0
        %387 = vmatprep.subr.mxu0 0.0
        %388 = vmatpush1.msra.mxu0 0.0
        %389 = vmatprep.subr.mxu0 0.0
        %390 = vmatpush1.msra.mxu0 0.0
        %391 = vmatprep.subr.mxu0 0.0
        %392 = vmatpush1.msra.mxu0 0.0
        %393 = vmatprep.subr.mxu0 0.0
        %394 = vmatpush1.msra.mxu0 0.0
        %395 = vmatprep.subr.mxu0 0.0
        %396 = vmatpush1.msra.mxu0 0.0
        %397 = vmatprep.subr.mxu0 0.0
        %398 = vmatpush1.msra.mxu0 0.0
        %399 = vmatprep.subr.mxu0 0.0
        %400 = vmatpush1.msra.mxu0 0.0
        %401 = vmatprep.subr.mxu0 0.0
        %402 = vmatpush1.msra.mxu0 0.0
        %403 = vmatprep.subr.mxu0 0.0
        %404 = vmatpush1.msra.mxu0 0.0
        %405 = vmatprep.subr.mxu0 0.0
        %406 = vmatpush1.msra.mxu0 0.0
        %407 = vmatprep.subr.mxu0 0.0
        %408 = vmatpush1.msra.mxu0 0.0
        %409 = vmatprep.subr.mxu0 0.0
        %410 = vmatpush1.msra.mxu0 0.0
        %411 = vmatprep.subr.mxu0 0.0
        %412 = vmatpush1.msra.mxu0 0.0
        %413 = vmatprep.subr.mxu0 0.0
        %414 = vmatpush1.msra.mxu0 0.0
        %415 = vmatprep.subr.mxu0 %v383
        %416 = vmatpush1.msra.mxu0 %v381
        %417 = vmatprep.subr.mxu0 0.0
        %418 = vmatpush2.msra.mxu0 0.0
        %419 = vmatprep.subr.mxu0 0.0
        %420 = vmatpush2.msra.mxu0 0.0
        %421 = vmatprep.subr.mxu0 0.0
        %422 = vmatpush2.msra.mxu0 0.0
        %423 = vmatprep.subr.mxu0 0.0
        %424 = vmatpush2.msra.mxu0 0.0
        %425 = vmatprep.subr.mxu0 0.0
        %426 = vmatpush2.msra.mxu0 0.0
        %427 = vmatprep.subr.mxu0 0.0
        %428 = vmatpush2.msra.mxu0 0.0
        %429 = vmatprep.subr.mxu0 0.0
        %430 = vmatpush2.msra.mxu0 0.0
        %431 = vmatprep.subr.mxu0 0.0
        %432 = vmatpush2.msra.mxu0 0.0
        %433 = vmatprep.subr.mxu0 0.0
        %434 = vmatpush2.msra.mxu0 0.0
        %435 = vmatprep.subr.mxu0 0.0
        %436 = vmatpush2.msra.mxu0 0.0
        %437 = vmatprep.subr.mxu0 0.0
        %438 = vmatpush2.msra.mxu0 0.0
        %439 = vmatprep.subr.mxu0 0.0
        %440 = vmatpush2.msra.mxu0 0.0
        %441 = vmatprep.subr.mxu0 0.0
        %442 = vmatpush2.msra.mxu0 0.0
        %443 = vmatprep.subr.mxu0 0.0
        %444 = vmatpush2.msra.mxu0 0.0
        %445 = vmatprep.subr.mxu0 0.0
        %446 = vmatpush2.msra.mxu0 0.0
        %447 = vmatprep.subr.mxu0 0.0
        %448 = vmatpush2.msra.mxu0 0.0
        %449 = vmatprep.mubr.f32.mxu0 0.0
        %450 = vmatmul.mubr.f32.gmra.mxu0 %v378
        %v451 = vpop.f32.mrf.mxu0
        %v452 = vadd.f32 %v372, %v451
        %v453 = vpop.f32.mrf.mxu0
        %v454 = vadd.f32 %v372, %v453
        %455 = vdwg.mxu0
        %456 = vst [vmem:[%s354] sm:$0x1f] %v452
        %457 = vst [vmem:[%s354 + $0x8] sm:$0x1f] %v454
        %v458 = vlaneseq
        %v459 = vshrl.u32 %v458, 7
        %vm460 = vcmp.lt.s32.totalorder %v459, 5
        %v461 = vsel %vm460, %v452, -1e+30
        %v462 = vsel %vm460, %v454, -1e+30
        %v463 = vrot.slane %v461, 4
        %v464 = vmax.f32 %v461, %v463
        %v465 = vrot.slane %v464, 2
        %v466 = vmax.f32 %v464, %v465
        %v467 = vrot.slane %v466, 1
        %v468 = vmax.f32 %v466, %v467
        %v469 = vrot.slane %v462, 4
        %v470 = vmax.f32 %v462, %v469
        %v471 = vrot.slane %v470, 2
        %v472 = vmax.f32 %v470, %v471
        %v473 = vrot.slane %v472, 1
        %v474 = vmax.f32 %v472, %v473
        %v475 = vsub.f32 %v461, %v468
        %v476 = vsub.f32 %v462, %v474
        %v477 = vmul.f32 %v475, 1.442695
        %v478 = vpow.pop %v477
        %v479 = vmul.f32 %v476, 1.442695
        %v480 = vpow.pop %v479
        %v481 = vrot.slane %v478, 4
        %v482 = vadd.f32 %v478, %v481
        %v483 = vrot.slane %v482, 2
        %v484 = vadd.f32 %v482, %v483
        %v485 = vrot.slane %v484, 1
        %v486 = vadd.f32 %v484, %v485
        %v487 = vrot.slane %v480, 4
        %v488 = vadd.f32 %v480, %v487
        %v489 = vrot.slane %v488, 2
        %v490 = vadd.f32 %v488, %v489
        %v491 = vrot.slane %v490, 1
        %v492 = vadd.f32 %v490, %v491
        %v493 = vlog2.pop %v486
        %v494 = vmul.f32 %v493, 0.6931472
        %v495 = vlog2.pop %v492
        %v496 = vmul.f32 %v495, 0.6931472
        %v497 = vadd.f32 %v468, %v494
        %v498 = vadd.f32 %v474, %v496
        %v499 = vld [vmem:[%s342] sm:$0x3]
        %v500 = vlaneseq
        %v501 = vshrl.u32 %v500, 7
        %v502 = vsub.s32 0, %v501
        %v503 = vrot.slane %v499, %v502
        %v504 = vlaneseq
        %v505 = vshrl.u32 %v504, 7
        %v506 = vsub.s32 1, %v505
        %v507 = vrot.slane %v499, %v506
        %vm508 = vcmp.eq.s32.totalorder %v459, %v503
        %vm509 = vcmp.eq.s32.totalorder %v459, %v507
        %v510 = vsel %vm508, %v452, 0.0
        %v511 = vsel %vm509, %v454, 0.0
        %v512 = vrot.slane %v510, 4
        %v513 = vadd.f32 %v510, %v512
        %v514 = vrot.slane %v513, 2
        %v515 = vadd.f32 %v513, %v514
        %v516 = vrot.slane %v515, 1
        %v517 = vadd.f32 %v515, %v516
        %v518 = vrot.slane %v511, 4
        %v519 = vadd.f32 %v511, %v518
        %v520 = vrot.slane %v519, 2
        %v521 = vadd.f32 %v519, %v520
        %v522 = vrot.slane %v521, 1
        %v523 = vadd.f32 %v521, %v522
        %vm524 = vcmp.ge.s32.totalorder %v499, 0
        %v525 = vsel %vm524, 1, 0
        %v526 = vcvt.s32.f32 %v525
        %v527 = vsub.f32 %v497, %v517
        %v528 = vsub.f32 %v498, %v523
        %v530 = vlaneseq
        %v531 = vshrl.u32 %v530, 7
        %v532 = vsub.s32 0, %v531
        %v533 = vrot.slane %v526, %v532
        %v534 = vlaneseq
        %v535 = vshrl.u32 %v534, 7
        %v536 = vsub.s32 1, %v535
        %v537 = vrot.slane %v526, %v536
        %v540 = vmul.f32 %v527, %v533
        %v541 = vmul.f32 %v528, %v537
        %v542 = vld [vmem:[#allocation2] sm:$0x1]
        %vm543 = vcmask 1040384
        %v544 = vsel %vm543, %v540, 0.0
        %v545 = vsel %vm543, %v541, 0.0
        %v546 = vadd.f32 %v544, %v545
        %547 = vadd.xlane.f32.xlu0 %v546
        %v548 = vpop.xlane.xlu0 %547
        %v549 = vadd.f32 %v542, %v548
        %vm550 = vcmask 0
        %551 = vst.msk [vmem:[#allocation2] sm:$0x1] %vm550, %v549
        %v552 = vld [vmem:[#allocation4] sm:$0x1]
        %v553 = vsel %vm543, %v533, 0.0
        %v554 = vsel %vm543, %v537, 0.0
        %v555 = vadd.f32 %v553, %v554
        %556 = vadd.xlane.f32.xlu0 %v555
        %v557 = vpop.xlane.xlu0 %556
        %v558 = vadd.f32 %v552, %v557
        %559 = vst.msk [vmem:[#allocation4] sm:$0x1] %vm550, %v558
        %s560 = sadd.s32 %s25, %s27
        %s561 = smul.u32 2, %s560
        %p562 = scmp.lt.s32.totalorder %s26, 1
        %s563 = scalar_select %p562, %s26, 1
        %p564 = scmp.lt.s32.totalorder %s561, 1
        %s565 = scalar_select %p564, %s561, 1
        %s566 = smul.addr %s563, 2
        %s567 = sadd.s32 %s565, %s566
        %s568 = smul.addr %s567, 8
        %s569 = scalar_lea.vmem %s4, %s568
        // Predicated region
        $region41: #{tpu_custom_call.1} parent=35 // pred_check
          %p570 = pneg %p163
        $region42: #{tpu_custom_call.1} parent=35 // pred_check_branch
          %572 = sbr.rel (%p570) target = $region44
        $region43: #{tpu_custom_call.1} parent=35 // pred_region
          %s573 = sadd.s32 %s25, %s27
          %s574 = smul.u32 2, %s573
        $region44: #{tpu_custom_call.1} parent=35 // pred_fallthru
          _
        // Predicated region
        $region45: #{tpu_custom_call.1} parent=35 // pred_check
          %p575 = pneg %p189
        $region46: #{tpu_custom_call.1} parent=35 // pred_check_branch
          %577 = sbr.rel (%p575) target = $region48
        $region47: #{tpu_custom_call.1} parent=35 // pred_region
          %s579 = ssub.s32 16, 16
          %580 = vsyncadd [#allocation3], %s579
          %s581 = smul.addr %s25, 16
          %s582 = scalar_lea.hbm %s5, %s581
          %s584 = sshll.u32 [#allocation2], 4
          %s585 = int_to_ptr.vmem [resolvable:$true] %s584
          %587 = dma.vmem_to_hbm [thread:$0]  %s585, 16, %s582, [#allocation3]
        $region48: #{tpu_custom_call.1} parent=35 // pred_fallthru
          _
        // Predicated region
        $region49: #{tpu_custom_call.1} parent=35 // pred_check
          %p588 = pneg %p215
        $region50: #{tpu_custom_call.1} parent=35 // pred_check_branch
          %590 = sbr.rel (%p588) target = $region52
        $region51: #{tpu_custom_call.1} parent=35 // pred_region
          %s592 = ssub.s32 16, 16
          %593 = vsyncadd [#allocation5], %s592
          %s594 = smul.addr %s25, 16
          %s595 = scalar_lea.hbm %s6, %s594
          %s597 = sshll.u32 [#allocation4], 4
          %s598 = int_to_ptr.vmem [resolvable:$true] %s597
          %600 = dma.vmem_to_hbm [thread:$0]  %s598, 16, %s595, [#allocation5]
        $region52: #{tpu_custom_call.1} parent=35 // pred_fallthru
          _
        // Predicated region
        $region53: #{tpu_custom_call.1} parent=35 // pred_check
          %p601 = pneg %p189
        $region54: #{tpu_custom_call.1} parent=35 // pred_check_branch
          %603 = sbr.rel (%p601) target = $region56
        $region55: #{tpu_custom_call.1} parent=35 // pred_region
          %604 = dma.done [#allocation3], 16
        $region56: #{tpu_custom_call.1} parent=35 // pred_fallthru
          _
        // Predicated region
        $region57: #{tpu_custom_call.1} parent=35 // pred_check
          %p605 = pneg %p215
        $region58: #{tpu_custom_call.1} parent=35 // pred_check_branch
          %607 = sbr.rel (%p605) target = $region60
        $region59: #{tpu_custom_call.1} parent=35 // pred_region
          %608 = dma.done [#allocation5], 16
        $region60: #{tpu_custom_call.1} parent=35 // pred_fallthru
          _
      $region36: #{tpu_custom_call.1} parent=5 // pred_fallthru
        _
      %p609 = scmp.le.s32.totalorder 2, %s15
      // Predicated region
      $region61: #{tpu_custom_call.1} parent=5 // pred_check
        %p610 = pneg %p609
      $region62: #{tpu_custom_call.1} parent=5 // pred_check_branch
        %612 = sbr.rel (%p610) target = $region64
      $region63: #{tpu_custom_call.1} parent=5 // pred_region
        %s613 = ssub.s32 %s15, 2
        // Predicated region
        $region65: #{tpu_custom_call.1} parent=63 // pred_check
          %p614 = pneg %p169
        $region66: #{tpu_custom_call.1} parent=63 // pred_check_branch
          %616 = sbr.rel (%p614) target = $region68
        $region67: #{tpu_custom_call.1} parent=63 // pred_region
          %s617 = sadd.s32 %s28, %s30
          %s618 = smul.u32 2, %s617
          %p619 = scmp.lt.s32.totalorder %s29, 1
          %s620 = scalar_select %p619, %s29, 1
          %p621 = scmp.lt.s32.totalorder %s618, 1
          %s622 = scalar_select %p621, %s618, 1
          %s623 = smul.addr %s620, 2
          %s624 = sadd.s32 %s622, %s623
          %s625 = smul.addr %s624, 8
          %s626 = scalar_lea.vmem %s4, %s625
        $region68: #{tpu_custom_call.1} parent=63 // pred_fallthru
          _
      $region64: #{tpu_custom_call.1} parent=5 // pred_fallthru
        _
    $region6: #{tpu_custom_call.1} parent=1 // loop_footer
      %s19 = sadd.s32 1, %s15
    $region7: #{tpu_custom_call.1} parent=1 // loop_footer_branch
      %14 = sbr.rel target = $region3
    $region8: #{tpu_custom_call.1} parent=1 // loop_exit
      _
    %627 = vsyncpa [#allocation3], 1
    %s628 = scalar_lea.sflag [#allocation3], 1
    %629 = vsyncpa %s628, 1
    %630 = vsyncpa [#allocation5], 1

</llo_original>
